<compile_context>
chip_gen: v5e
topology: v5e:2x2
jax: 0.10.0
libtpu: 0.0.40
codegen_flags: <defaults>
</compile_context>

<pallas_src>
import functools

import jax
import jax.numpy as jnp
from jax import lax
from jax.experimental import pallas as pl
from jax.experimental.pallas import tpu as pltpu


def resblock_kernel(xp_ref, w1_ref, w2_ref, wd_ref, o_ref, *, H, nb):
    # xp_ref: (nb*(H+4), W*Cin)  nb images stacked along rows, each pre-padded
    #                            with 2 zero rows on each side; lanes = w*Cin+ci
    # w1_ref: (3, W*Cin,  W*Cout)  conv1: banded weight per ky tap
    # w2_ref: (3, W*Cout, W*Cout)  conv2: banded weight per ky tap
    # wd_ref: (W*Cin, W*Cout)      1x1 downsample: block-diagonal weight
    # o_ref : (nb*H, W*Cout)       lane-dense output slab
    stride = H + 4                    # rows per image in the stacked slab
    R = nb * stride
    M1 = R - 2                        # conv1 output rows (incl. per-image halos)
    M2 = R - 4                        # conv2 / residual candidate rows
    f32 = jnp.float32

    # conv1 (3x3, pad=1, no bias): one MXU matmul per ky tap over the whole
    # stacked slab.  Inter-image junk rows come out zero because they only see
    # the zero padding rows of adjacent images.
    out1 = jnp.dot(xp_ref[0:M1, :], w1_ref[0], preferred_element_type=f32)
    out1 = out1 + jnp.dot(xp_ref[1:M1 + 1, :], w1_ref[1], preferred_element_type=f32)
    out1 = out1 + jnp.dot(xp_ref[2:M1 + 2, :], w1_ref[2], preferred_element_type=f32)

    # dropout1: eval-mode identity; relu (f32 VPU)
    out1 = jnp.maximum(out1, 0.0)

    # conv2's zero padding along H: within each image's (H+4)-row band only
    # rows 1..H of out1 are real conv1 outputs; rows 0 / H+1 act as conv2's pad
    # rows and must be zero.  Sublane-only mask (shape (M1, 1)), broadcast over
    # lanes in the where.
    r = lax.broadcasted_iota(jnp.int32, (M1, 1), 0)
    p = r % stride
    out1 = jnp.where((p >= 1) & (p <= H), out1, 0.0)

    out1b = out1.astype(xp_ref.dtype)   # bf16 (or f32) operands for 2nd MXU pass

    # conv2 (3x3) + residual (1x1 downsample) -> single f32 accumulator.
    acc = jnp.dot(out1b[0:M2, :], w2_ref[0], preferred_element_type=f32)
    acc = acc + jnp.dot(out1b[1:M2 + 1, :], w2_ref[1], preferred_element_type=f32)
    acc = acc + jnp.dot(out1b[2:M2 + 2, :], w2_ref[2], preferred_element_type=f32)
    acc = acc + jnp.dot(xp_ref[2:M2 + 2, :], wd_ref[...], preferred_element_type=f32)

    # relu; cast only at the store (epilogue kept in f32)
    out = jnp.maximum(acc, 0.0).astype(o_ref.dtype)

    # Gather the H valid rows of each image into the contiguous, lane-dense
    # output slab.  nb is a small static constant -> static slices, full-width
    # unmasked 128-lane stores.
    for i in range(nb):
        o_ref[i * H:(i + 1) * H, :] = out[i * stride:i * stride + H, :]


def _band_conv_weight(w_oihw, W):
    """OIHW 3x3 weights -> (3, W*Cin, W*Cout) banded matmul weights (per ky)."""
    w = jnp.transpose(w_oihw, (2, 3, 1, 0))              # (3, 3, Cin, Cout) HWIO
    Cin, Cout = w.shape[2], w.shape[3]
    x_in = jnp.arange(W)[:, None]
    x_out = jnp.arange(W)[None, :]
    dx = x_in - x_out + 1                                # (W_in, W_out)
    valid = ((dx >= 0) & (dx <= 2)).astype(w.dtype)
    dx_c = jnp.clip(dx, 0, 2)
    big = w[:, dx_c, :, :] * valid[None, :, :, None, None]   # (3, Wi, Wo, Ci, Co)
    big = jnp.transpose(big, (0, 1, 3, 2, 4))                 # (3, Wi, Ci, Wo, Co)
    return big.reshape(3, W * Cin, W * Cout)


def _band_down_weight(wd_oihw, W):
    """OIHW 1x1 weights -> (W*Cin, W*Cout) block-diagonal matmul weight."""
    wd = jnp.transpose(wd_oihw[:, :, 0, 0], (1, 0))      # (Cin, Cout)
    Cin, Cout = wd.shape
    eye = jnp.eye(W, dtype=wd.dtype)
    big = eye[:, None, :, None] * wd[None, :, None, :]   # (W, Cin, W, Cout)
    return big.reshape(W * Cin, W * Cout)


def _pick_batch_block(N, H, max_nb=8):
    """Largest batch block <= max_nb that divides N and keeps the row-blocked
    (rows, lanes) BlockSpecs (8,128)-legal (block rows % 8 == 0 or == full)."""
    best = None
    for nb in range(1, min(N, max_nb) + 1):
        if N % nb:
            continue
        ok_in = (nb == N) or (nb * (H + 4)) % 8 == 0
        ok_out = (nb == N) or (nb * H) % 8 == 0
        if ok_in and ok_out:
            best = nb
    return best if best is not None else N


def resblock_pallas(x_nchw, w1_oihw, w2_oihw, wd_oihw, *, nb=None,
                    dot_dtype=jnp.bfloat16):
    """ResBlock forward (stride=1, in_channels != out_channels -> 1x1 downsample)."""
    N, Cin, H, W = x_nchw.shape
    Cout = w1_oihw.shape[0]
    if nb is None:
        nb = _pick_batch_block(N, H)
    assert N % nb == 0

    # Layout glue (module boundary is NCHW) -> stacked lane-dense slab with 2
    # zero H-halo rows on each side of every image.  W padding lives in the
    # banded weights.  (See TODO(synk) above about moving this out of the hot path.)
    x_rows = jnp.transpose(x_nchw, (0, 2, 3, 1)).reshape(N, H, W * Cin)
    xp = jnp.pad(x_rows, ((0, 0), (2, 2), (0, 0))).astype(dot_dtype)
    xp = xp.reshape(N * (H + 4), W * Cin)                # contiguous -> free

    w1b = _band_conv_weight(w1_oihw, W).astype(dot_dtype)   # (3, W*Cin,  W*Cout)
    w2b = _band_conv_weight(w2_oihw, W).astype(dot_dtype)   # (3, W*Cout, W*Cout)
    wdb = _band_down_weight(wd_oihw, W).astype(dot_dtype)   # (W*Cin, W*Cout)

    # VMEM budget (per step, double-buffered): activation block
    # nb*(H+4)*W*Cin + resident banded weights (quadratic in W*C!) ~= 0.2 MiB
    # here.  TODO(synk): for production W*C, tile the N=W*Cout axis across a
    # grid dim (or fall back to per-tap channels-last contraction) so
    # weights*2 + blocks stays well under v7x's 64 MiB physical VMEM.
    kernel = functools.partial(resblock_kernel, H=H, nb=nb)

    out_flat = pl.pallas_call(
        kernel,
        out_shape=jax.ShapeDtypeStruct((N * H, W * Cout), jnp.float32),
        grid=(N // nb,),
        in_specs=[
            pl.BlockSpec((nb * (H + 4), W * Cin), lambda n: (n, 0)),
            pl.BlockSpec((3, W * Cin, W * Cout), lambda n: (0, 0, 0)),
            pl.BlockSpec((3, W * Cout, W * Cout), lambda n: (0, 0, 0)),
            pl.BlockSpec((W * Cin, W * Cout), lambda n: (0, 0)),
        ],
        out_specs=pl.BlockSpec((nb * H, W * Cout), lambda n: (n, 0)),
        compiler_params=pltpu.CompilerParams(
            # batch-block axis is independent -> shard across v7x's 2 TCs
            dimension_semantics=("parallel",),
            vmem_limit_bytes=32 * 1024 * 1024,
        ),
    )(xp, w1b, w2b, wdb)

    out_nhwc = out_flat.reshape(N, H, W, Cout)
    return jnp.transpose(out_nhwc, (0, 3, 1, 2))         # back to NCHW


def resblock_reference(x, w1, w2, wd):
    """Pure-JAX f32 reference in NCHW (matches PyTorch eval-mode forward)."""
    dn = ('NCHW', 'OIHW', 'NCHW')
    conv = lambda a, w, pad: lax.conv_general_dilated(
        a, w, window_strides=(1, 1), padding=pad, dimension_numbers=dn)
    out = conv(x, w1, ((1, 1), (1, 1)))
    out = jnp.maximum(out, 0.0)                          # dropout(eval)=id, relu
    out = conv(out, w2, ((1, 1), (1, 1)))
    residual = conv(x, wd, ((0, 0), (0, 0)))
    return jnp.maximum(out + residual, 0.0)


if __name__ == "__main__":
    # small shapes: batch=2, in_channels=4, out_channels=8, spatial=16, stride=1
    N, Cin, Cout, H, W = 2, 4, 8, 16, 16

    key = jax.random.PRNGKey(0)
    kx, k1, k2, kd = jax.random.split(key, 4)
    x = jax.random.normal(kx, (N, Cin, H, W), jnp.float32)
    w1 = 0.1 * jax.random.normal(k1, (Cout, Cin, 3, 3), jnp.float32)   # conv1
    w2 = 0.1 * jax.random.normal(k2, (Cout, Cout, 3, 3), jnp.float32)  # conv2
    wd = 0.1 * jax.random.normal(kd, (Cout, Cin, 1, 1), jnp.float32)   # downsample

    ref = jax.block_until_ready(resblock_reference(x, w1, w2, wd))

    # 1) exactness of the banded-matmul formulation (f32 operands, strict tol)
    out_f32 = jax.block_until_ready(
        resblock_pallas(x, w1, w2, wd, dot_dtype=jnp.float32))
    assert out_f32.shape == (N, Cout, H, W), out_f32.shape
    err_f32 = float(jnp.max(jnp.abs(out_f32 - ref)))
    assert jnp.allclose(out_f32, ref, rtol=1e-3, atol=1e-3), err_f32

    # 2) fast path: bf16 MXU operands, f32 accumulation/epilogue (relaxed tol)
    out_bf16 = jax.block_until_ready(resblock_pallas(x, w1, w2, wd))
    assert out_bf16.shape == (N, Cout, H, W), out_bf16.shape
    err_bf16 = float(jnp.max(jnp.abs(out_bf16 - ref)))
    assert jnp.allclose(out_bf16, ref, rtol=5e-2, atol=5e-2), err_bf16

    print("KERNEL_OK")
</pallas_src>

<mosaic_0001>
module attributes {stable_mosaic.version = 11 : i64} {
  func.func @resblock_kernel(%arg0: i32, %arg1: memref<40x64xf32, #tpu.memory_space<vmem>>, %arg2: memref<3x64x128xf32, #tpu.memory_space<vmem>>, %arg3: memref<3x128x128xf32, #tpu.memory_space<vmem>>, %arg4: memref<64x128xf32, #tpu.memory_space<vmem>>, %arg5: memref<32x128xf32, #tpu.memory_space<vmem>>) attributes {dimension_semantics = [#tpu.dimension_semantics<parallel>], iteration_bounds = array<i64: 1>, scalar_prefetch = 0 : i64, scratch_operands = 0 : i64, tpu.core_type = #tpu.core_type<tc>, window_params = [{transform_indices = @transform_0, window_bounds = array<i64: 40, 64>}, {pipeline_mode = #tpu.pipeline_mode<synchronous>, transform_indices = @transform_1, window_bounds = array<i64: 3, 64, 128>}, {pipeline_mode = #tpu.pipeline_mode<synchronous>, transform_indices = @transform_2, window_bounds = array<i64: 3, 128, 128>}, {pipeline_mode = #tpu.pipeline_mode<synchronous>, transform_indices = @transform_3, window_bounds = array<i64: 64, 128>}, {transform_indices = @transform_4, window_bounds = array<i64: 32, 128>}]} {
    %c0 = arith.constant 0 : index
    %c0_0 = arith.constant 0 : index
    %0 = vector.load %arg1[%c0, %c0_0] : memref<40x64xf32, #tpu.memory_space<vmem>>, vector<38x64xf32>
    %c0_1 = arith.constant 0 : index
    %c0_2 = arith.constant 0 : index
    %c0_3 = arith.constant 0 : index
    %1 = vector.load %arg2[%c0_1, %c0_2, %c0_3] : memref<3x64x128xf32, #tpu.memory_space<vmem>>, vector<1x64x128xf32>
    %2 = vector.shape_cast %1 : vector<1x64x128xf32> to vector<64x128xf32>
    %cst = arith.constant dense<0.000000e+00> : vector<38x128xf32>
    %3 = tpu.matmul %0, %2, %cst {dimension_numbers = #tpu.dot_dimension_numbers<[1], [0], [0], [1], [0, 0, 1, 1], [], []>} : vector<38x64xf32>, vector<64x128xf32>, vector<38x128xf32> -> vector<38x128xf32>
    %c1 = arith.constant 1 : index
    %c0_4 = arith.constant 0 : index
    %4 = vector.load %arg1[%c1, %c0_4] : memref<40x64xf32, #tpu.memory_space<vmem>>, vector<38x64xf32>
    %c1_5 = arith.constant 1 : index
    %c0_6 = arith.constant 0 : index
    %c0_7 = arith.constant 0 : index
    %5 = vector.load %arg2[%c1_5, %c0_6, %c0_7] : memref<3x64x128xf32, #tpu.memory_space<vmem>>, vector<1x64x128xf32>
    %6 = vector.shape_cast %5 : vector<1x64x128xf32> to vector<64x128xf32>
    %cst_8 = arith.constant dense<0.000000e+00> : vector<38x128xf32>
    %7 = tpu.matmul %4, %6, %cst_8 {dimension_numbers = #tpu.dot_dimension_numbers<[1], [0], [0], [1], [0, 0, 1, 1], [], []>} : vector<38x64xf32>, vector<64x128xf32>, vector<38x128xf32> -> vector<38x128xf32>
    %8 = arith.addf %3, %7 : vector<38x128xf32>
    %c2 = arith.constant 2 : index
    %c0_9 = arith.constant 0 : index
    %9 = vector.load %arg1[%c2, %c0_9] : memref<40x64xf32, #tpu.memory_space<vmem>>, vector<38x64xf32>
    %c2_10 = arith.constant 2 : index
    %c0_11 = arith.constant 0 : index
    %c0_12 = arith.constant 0 : index
    %10 = vector.load %arg2[%c2_10, %c0_11, %c0_12] : memref<3x64x128xf32, #tpu.memory_space<vmem>>, vector<1x64x128xf32>
    %11 = vector.shape_cast %10 : vector<1x64x128xf32> to vector<64x128xf32>
    %cst_13 = arith.constant dense<0.000000e+00> : vector<38x128xf32>
    %12 = tpu.matmul %9, %11, %cst_13 {dimension_numbers = #tpu.dot_dimension_numbers<[1], [0], [0], [1], [0, 0, 1, 1], [], []>} : vector<38x64xf32>, vector<64x128xf32>, vector<38x128xf32> -> vector<38x128xf32>
    %13 = arith.addf %8, %12 : vector<38x128xf32>
    %cst_14 = arith.constant 0.000000e+00 : f32
    %14 = vector.broadcast %cst_14 : f32 to vector<38x128xf32>
    %15 = arith.maximumf %13, %14 : vector<38x128xf32>
    %16 = tpu.iota {dimensions = array<i32: 0>} : vector<38x1xi32>
    %c20_i32 = arith.constant 20 : i32
    %c0_i32 = arith.constant 0 : i32
    %17 = arith.cmpi eq, %c20_i32, %c0_i32 : i32
    %c1_i32 = arith.constant 1 : i32
    %18 = arith.select %17, %c1_i32, %c20_i32 : i32
    %19 = vector.broadcast %18 : i32 to vector<38x1xi32>
    %20 = arith.remsi %16, %19 : vector<38x1xi32>
    %c0_i32_15 = arith.constant 0 : i32
    %21 = vector.broadcast %c0_i32_15 : i32 to vector<38x1xi32>
    %22 = arith.cmpi ne, %20, %21 : vector<38x1xi32>
    %c0_i32_16 = arith.constant 0 : i32
    %23 = vector.broadcast %c0_i32_16 : i32 to vector<38x1xi32>
    %24 = arith.cmpi slt, %20, %23 : vector<38x1xi32>
    %c0_i32_17 = arith.constant 0 : i32
    %25 = arith.cmpi slt, %18, %c0_i32_17 : i32
    %26 = vector.broadcast %25 : i1 to vector<38x1xi1>
    %27 = vector.broadcast %26 : vector<38x1xi1> to vector<38x1xi1>
    %28 = arith.xori %24, %27 : vector<38x1xi1>
    %29 = arith.andi %28, %22 : vector<38x1xi1>
    %30 = vector.broadcast %18 : i32 to vector<38x1xi32>
    %31 = arith.addi %20, %30 : vector<38x1xi32>
    %32 = arith.select %29, %31, %20 : vector<38x1xi1>, vector<38x1xi32>
    %c1_i32_18 = arith.constant 1 : i32
    %33 = vector.broadcast %c1_i32_18 : i32 to vector<38x1xi32>
    %34 = arith.cmpi sge, %32, %33 : vector<38x1xi32>
    %c16_i32 = arith.constant 16 : i32
    %35 = vector.broadcast %c16_i32 : i32 to vector<38x1xi32>
    %36 = arith.cmpi sle, %32, %35 : vector<38x1xi32>
    %37 = arith.andi %34, %36 : vector<38x1xi1>
    %cst_19 = arith.constant 0.000000e+00 : f32
    %38 = vector.shape_cast %37 : vector<38x1xi1> to vector<38x1xi1>
    %39 = vector.broadcast %38 : vector<38x1xi1> to vector<38x128xi1>
    %40 = vector.broadcast %cst_19 : f32 to vector<38x128xf32>
    %41 = arith.select %39, %15, %40 : vector<38x128xi1>, vector<38x128xf32>
    %42 = vector.extract_strided_slice %41 {offsets = [0, 0], sizes = [36, 128], strides = [1, 1]} : vector<38x128xf32> to vector<36x128xf32>
    %c0_20 = arith.constant 0 : index
    %c0_21 = arith.constant 0 : index
    %c0_22 = arith.constant 0 : index
    %43 = vector.load %arg3[%c0_20, %c0_21, %c0_22] : memref<3x128x128xf32, #tpu.memory_space<vmem>>, vector<1x128x128xf32>
    %44 = vector.shape_cast %43 : vector<1x128x128xf32> to vector<128x128xf32>
    %cst_23 = arith.constant dense<0.000000e+00> : vector<36x128xf32>
    %45 = tpu.matmul %42, %44, %cst_23 {dimension_numbers = #tpu.dot_dimension_numbers<[1], [0], [0], [1], [0, 0, 1, 1], [], []>} : vector<36x128xf32>, vector<128x128xf32>, vector<36x128xf32> -> vector<36x128xf32>
    %46 = vector.extract_strided_slice %41 {offsets = [1, 0], sizes = [36, 128], strides = [1, 1]} : vector<38x128xf32> to vector<36x128xf32>
    %c1_24 = arith.constant 1 : index
    %c0_25 = arith.constant 0 : index
    %c0_26 = arith.constant 0 : index
    %47 = vector.load %arg3[%c1_24, %c0_25, %c0_26] : memref<3x128x128xf32, #tpu.memory_space<vmem>>, vector<1x128x128xf32>
    %48 = vector.shape_cast %47 : vector<1x128x128xf32> to vector<128x128xf32>
    %cst_27 = arith.constant dense<0.000000e+00> : vector<36x128xf32>
    %49 = tpu.matmul %46, %48, %cst_27 {dimension_numbers = #tpu.dot_dimension_numbers<[1], [0], [0], [1], [0, 0, 1, 1], [], []>} : vector<36x128xf32>, vector<128x128xf32>, vector<36x128xf32> -> vector<36x128xf32>
    %50 = arith.addf %45, %49 : vector<36x128xf32>
    %51 = vector.extract_strided_slice %41 {offsets = [2, 0], sizes = [36, 128], strides = [1, 1]} : vector<38x128xf32> to vector<36x128xf32>
    %c2_28 = arith.constant 2 : index
    %c0_29 = arith.constant 0 : index
    %c0_30 = arith.constant 0 : index
    %52 = vector.load %arg3[%c2_28, %c0_29, %c0_30] : memref<3x128x128xf32, #tpu.memory_space<vmem>>, vector<1x128x128xf32>
    %53 = vector.shape_cast %52 : vector<1x128x128xf32> to vector<128x128xf32>
    %cst_31 = arith.constant dense<0.000000e+00> : vector<36x128xf32>
    %54 = tpu.matmul %51, %53, %cst_31 {dimension_numbers = #tpu.dot_dimension_numbers<[1], [0], [0], [1], [0, 0, 1, 1], [], []>} : vector<36x128xf32>, vector<128x128xf32>, vector<36x128xf32> -> vector<36x128xf32>
    %55 = arith.addf %50, %54 : vector<36x128xf32>
    %c2_32 = arith.constant 2 : index
    %c0_33 = arith.constant 0 : index
    %56 = vector.load %arg1[%c2_32, %c0_33] : memref<40x64xf32, #tpu.memory_space<vmem>>, vector<36x64xf32>
    %c0_34 = arith.constant 0 : index
    %c0_35 = arith.constant 0 : index
    %57 = vector.load %arg4[%c0_34, %c0_35] : memref<64x128xf32, #tpu.memory_space<vmem>>, vector<64x128xf32>
    %cst_36 = arith.constant dense<0.000000e+00> : vector<36x128xf32>
    %58 = tpu.matmul %56, %57, %cst_36 {dimension_numbers = #tpu.dot_dimension_numbers<[1], [0], [0], [1], [0, 0, 1, 1], [], []>} : vector<36x64xf32>, vector<64x128xf32>, vector<36x128xf32> -> vector<36x128xf32>
    %59 = arith.addf %55, %58 : vector<36x128xf32>
    %cst_37 = arith.constant 0.000000e+00 : f32
    %60 = vector.broadcast %cst_37 : f32 to vector<36x128xf32>
    %61 = arith.maximumf %59, %60 : vector<36x128xf32>
    %62 = vector.extract_strided_slice %61 {offsets = [0, 0], sizes = [16, 128], strides = [1, 1]} : vector<36x128xf32> to vector<16x128xf32>
    %c0_38 = arith.constant 0 : index
    %c0_39 = arith.constant 0 : index
    %63 = vector.load %arg5[%c0_38, %c0_39] : memref<32x128xf32, #tpu.memory_space<vmem>>, vector<16x128xf32>
    tpu.vector_store %arg5[%c0_38, %c0_39], %62 {strides = array<i32>} : memref<32x128xf32, #tpu.memory_space<vmem>>, vector<16x128xf32>,
    %64 = vector.extract_strided_slice %61 {offsets = [20, 0], sizes = [16, 128], strides = [1, 1]} : vector<36x128xf32> to vector<16x128xf32>
    %c16 = arith.constant 16 : index
    %c0_40 = arith.constant 0 : index
    %65 = vector.load %arg5[%c16, %c0_40] : memref<32x128xf32, #tpu.memory_space<vmem>>, vector<16x128xf32>
    tpu.vector_store %arg5[%c16, %c0_40], %64 {strides = array<i32>} : memref<32x128xf32, #tpu.memory_space<vmem>>, vector<16x128xf32>,
    return
  }
  func.func @transform_0(%arg0: i32) -> (i32, i32) {
    %c0_i32 = arith.constant 0 : i32
    %c0_i32_0 = arith.constant 0 : i32
    return %arg0, %c0_i32 : i32, i32
  }
  func.func @transform_1(%arg0: i32) -> (i32, i32, i32) {
    %c0_i32 = arith.constant 0 : i32
    %c0_i32_0 = arith.constant 0 : i32
    %c0_i32_1 = arith.constant 0 : i32
    %c0_i32_2 = arith.constant 0 : i32
    return %c0_i32, %c0_i32_0, %c0_i32_1 : i32, i32, i32
  }
  func.func @transform_2(%arg0: i32) -> (i32, i32, i32) {
    %c0_i32 = arith.constant 0 : i32
    %c0_i32_0 = arith.constant 0 : i32
    %c0_i32_1 = arith.constant 0 : i32
    %c0_i32_2 = arith.constant 0 : i32
    return %c0_i32, %c0_i32_0, %c0_i32_1 : i32, i32, i32
  }
  func.func @transform_3(%arg0: i32) -> (i32, i32) {
    %c0_i32 = arith.constant 0 : i32
    %c0_i32_0 = arith.constant 0 : i32
    %c0_i32_1 = arith.constant 0 : i32
    return %c0_i32, %c0_i32_0 : i32, i32
  }
  func.func @transform_4(%arg0: i32) -> (i32, i32) {
    %c0_i32 = arith.constant 0 : i32
    %c0_i32_0 = arith.constant 0 : i32
    return %arg0, %c0_i32 : i32, i32
  }
}

</mosaic_0001>

<llo_original>
// kernel: tpu_custom_call.1
$region0: #{tpu_custom_call.1}
  #allocation0 [shape = 'u32[]', space=smem, size = 0x4, offset = 0x4, fixed_abs, tag = 'smem constant byte address 0x4 - core index']
  #allocation1 [shape = 'u32[72,128]{1,0:T(1,128)}', space=vmem, size = 0x9000, scoped, tag = 'internal scratch']
  %s0 = inlined_call_operand.hbm [shape: f32[40,64], index: 0, kind: input, shape index: {}]
  %s1 = inlined_call_operand.hbm [shape: f32[3,64,128], index: 1, kind: input, shape index: {}]
  %s2 = inlined_call_operand.hbm [shape: f32[3,128,128], index: 2, kind: input, shape index: {}]
  %s3 = inlined_call_operand.hbm [shape: f32[64,128], index: 3, kind: input, shape index: {}]
  %s4 = inlined_call_operand.hbm [shape: f32[32,128], index: 4, kind: output, shape index: {}]
  %s5 = sld [smem:[#allocation0]]
  $region42: #{tpu_custom_call.1} parent=0
    _
  %s7 = ssub.s32 1, %s5
  %s8 = scalar_select 0, %s7, %s5
  $region1: #{tpu_custom_call.1} parent=0
    #allocation2 [shape = 'u8[20480]{0}', space=vmem, size = 0x5000, scoped, tag = 'input window, operand 0, single buffered']
    #allocation3 [shape = 's32[1]{0}', space=sflag, size = 0x4, scoped, tag = 'scoped memory for tpu_custom_call.1']
    #allocation4 [shape = 's32[1]{0}', space=sflag, size = 0x4, scoped, tag = 'scoped memory for tpu_custom_call.1']
    #allocation5 [shape = 'u8[98304]{0}', space=vmem, size = 0x18000, scoped, tag = 'input window, operand 1, single buffered']
    #allocation6 [shape = 's32[1]{0}', space=sflag, size = 0x4, scoped, tag = 'scoped memory for tpu_custom_call.1']
    #allocation7 [shape = 'u8[196608]{0}', space=vmem, size = 0x30000, scoped, tag = 'input window, operand 2, single buffered']
    #allocation8 [shape = 'u8[32768]{0}', space=vmem, size = 0x8000, scoped, tag = 'input window, operand 3, single buffered']
    #allocation9 [shape = 's32[1]{0}', space=sflag, size = 0x4, scoped, tag = 'scoped memory for tpu_custom_call.1']
    #allocation10 [shape = 'u8[16384]{0}', space=vmem, size = 0x4000, scoped, tag = 'output window, operand 0, single buffered']
    %9 = vsyncpa [#allocation3], 0
    %10 = vsyncpa [#allocation6], 0
    %11 = vsyncpa [#allocation9], 0
    %12 = vsyncpa [#allocation4], 0
    // Predicated region
    $region2: #{tpu_custom_call.1} parent=1 // pred_check
      _
    $region3: #{tpu_custom_call.1} parent=1 // pred_check_branch
      %14 = sbr.rel (0) target = $region5
    $region4: #{tpu_custom_call.1} parent=1 // pred_region
      %16 = vsyncadd [#allocation3], 0
      %s17 = sshll.u32 %s0, 4
      %s18 = int_to_ptr.hbm [resolvable:$true] %s17
      %s19 = sshll.u32 [#allocation2], 4
      %s20 = int_to_ptr.vmem [resolvable:$true] %s19
      %25 = dma.hbm_to_vmem [thread:$0]  %s18, 640, %s20, [#allocation3], 128, 128, 8
    $region5: #{tpu_custom_call.1} parent=1 // pred_fallthru
      _
    // Predicated region
    $region6: #{tpu_custom_call.1} parent=1 // pred_check
      _
    $region7: #{tpu_custom_call.1} parent=1 // pred_check_branch
      %27 = sbr.rel (0) target = $region9
    $region8: #{tpu_custom_call.1} parent=1 // pred_region
      %29 = vsyncadd [#allocation6], 0
      %s30 = sshll.u32 %s1, 4
      %s31 = int_to_ptr.hbm [resolvable:$true] %s30
      %s32 = sshll.u32 [#allocation5], 4
      %s33 = int_to_ptr.vmem [resolvable:$true] %s32
      %38 = dma.hbm_to_vmem [thread:$0]  %s31, 3072, %s33, [#allocation6], 128, 128, 8
    $region9: #{tpu_custom_call.1} parent=1 // pred_fallthru
      _
    // Predicated region
    $region10: #{tpu_custom_call.1} parent=1 // pred_check
      _
    $region11: #{tpu_custom_call.1} parent=1 // pred_check_branch
      %40 = sbr.rel (0) target = $region13
    $region12: #{tpu_custom_call.1} parent=1 // pred_region
      %42 = vsyncadd [#allocation6], 0
      %s43 = sshll.u32 %s2, 4
      %s44 = int_to_ptr.hbm [resolvable:$true] %s43
      %s45 = sshll.u32 [#allocation7], 4
      %s46 = int_to_ptr.vmem [resolvable:$true] %s45
      %51 = dma.hbm_to_vmem [thread:$0]  %s44, 6144, %s46, [#allocation6], 128, 128, 8
    $region13: #{tpu_custom_call.1} parent=1 // pred_fallthru
      _
    // Predicated region
    $region14: #{tpu_custom_call.1} parent=1 // pred_check
      _
    $region15: #{tpu_custom_call.1} parent=1 // pred_check_branch
      %53 = sbr.rel (0) target = $region17
    $region16: #{tpu_custom_call.1} parent=1 // pred_region
      %55 = vsyncadd [#allocation9], 0
      %s56 = sshll.u32 %s3, 4
      %s57 = int_to_ptr.hbm [resolvable:$true] %s56
      %s58 = sshll.u32 [#allocation8], 4
      %s59 = int_to_ptr.vmem [resolvable:$true] %s58
      %64 = dma.hbm_to_vmem [thread:$0]  %s57, 1024, %s59, [#allocation9], 128, 128, 8
    $region17: #{tpu_custom_call.1} parent=1 // pred_fallthru
      _
    // Predicated region
    $region18: #{tpu_custom_call.1} parent=1 // pred_check
      _
    $region19: #{tpu_custom_call.1} parent=1 // pred_check_branch
      %66 = sbr.rel (0) target = $region21
    $region20: #{tpu_custom_call.1} parent=1 // pred_region
      %68 = dma.done [#allocation3], 640
    $region21: #{tpu_custom_call.1} parent=1 // pred_fallthru
      _
    // Predicated region
    $region22: #{tpu_custom_call.1} parent=1 // pred_check
      _
    $region23: #{tpu_custom_call.1} parent=1 // pred_check_branch
      %70 = sbr.rel (0) target = $region25
    $region24: #{tpu_custom_call.1} parent=1 // pred_region
      %72 = dma.done [#allocation6], 3072
    $region25: #{tpu_custom_call.1} parent=1 // pred_fallthru
      _
    // Predicated region
    $region26: #{tpu_custom_call.1} parent=1 // pred_check
      _
    $region27: #{tpu_custom_call.1} parent=1 // pred_check_branch
      %74 = sbr.rel (0) target = $region29
    $region28: #{tpu_custom_call.1} parent=1 // pred_region
      %76 = dma.done [#allocation6], 6144
    $region29: #{tpu_custom_call.1} parent=1 // pred_fallthru
      _
    // Predicated region
    $region30: #{tpu_custom_call.1} parent=1 // pred_check
      _
    $region31: #{tpu_custom_call.1} parent=1 // pred_check_branch
      %78 = sbr.rel (0) target = $region33
    $region32: #{tpu_custom_call.1} parent=1 // pred_region
      %80 = dma.done [#allocation9], 1024
    $region33: #{tpu_custom_call.1} parent=1 // pred_fallthru
      _
    %v81 = vld [vmem:[#allocation2] sm:$0xff]
    %v82 = vld [vmem:[#allocation2 + $0x8] sm:$0xff]
    %v83 = vld [vmem:[#allocation2 + $0x10] sm:$0xff]
    %v84 = vld [vmem:[#allocation2 + $0x18] sm:$0xff]
    %v85 = vld [vmem:[#allocation2 + $0x20] sm:$0x3f]
    %v86 = vld [vmem:[#allocation5] sm:$0xff]
    %v87 = vld [vmem:[#allocation5 + $0x8] sm:$0xff]
    %v88 = vld [vmem:[#allocation5 + $0x10] sm:$0xff]
    %v89 = vld [vmem:[#allocation5 + $0x18] sm:$0xff]
    %v90 = vld [vmem:[#allocation5 + $0x20] sm:$0xff]
    %v91 = vld [vmem:[#allocation5 + $0x28] sm:$0xff]
    %v92 = vld [vmem:[#allocation5 + $0x30] sm:$0xff]
    %v93 = vld [vmem:[#allocation5 + $0x38] sm:$0xff]
    %v94 = vld [vmem:[#allocation2 + $0x1] sm:$0xff]
    %v95 = vld [vmem:[#allocation2 + $0x9] sm:$0xff]
    %v96 = vld [vmem:[#allocation2 + $0x11] sm:$0xff]
    %v97 = vld [vmem:[#allocation2 + $0x19] sm:$0xff]
    %v98 = vld [vmem:[#allocation2 + $0x21] sm:$0x3f]
    %s99 = scalar_lea.vmem [#allocation5], 64
    %v100 = vld [vmem:[%s99] sm:$0xff]
    %v101 = vld [vmem:[%s99 + $0x8] sm:$0xff]
    %v102 = vld [vmem:[%s99 + $0x10] sm:$0xff]
    %v103 = vld [vmem:[%s99 + $0x18] sm:$0xff]
    %v104 = vld [vmem:[%s99 + $0x20] sm:$0xff]
    %v105 = vld [vmem:[%s99 + $0x28] sm:$0xff]
    %v106 = vld [vmem:[%s99 + $0x30] sm:$0xff]
    %v107 = vld [vmem:[%s99 + $0x38] sm:$0xff]
    %vm108 = vcmask 523264
    %v110 = vsel %vm108, %v94, 0
    %v113 = vsel %vm108, %v95, 0
    %v116 = vsel %vm108, %v96, 0
    %v119 = vsel %vm108, %v97, 0
    %v122 = vsel %vm108, %v98, 0
    %124 = vmatpush.msra.mxu0 0.0
    %125 = vmatpush.msra.mxu0 0.0
    %126 = vmatpush.msra.mxu0 0.0
    %127 = vmatpush.msra.mxu0 0.0
    %128 = vmatpush.msra.mxu0 0.0
    %129 = vmatpush.msra.mxu0 0.0
    %130 = vmatpush.msra.mxu0 0.0
    %131 = vmatpush.msra.mxu0 0.0
    %132 = vmatpush.msra.mxu0 %v107
    %133 = vmatpush.msra.mxu0 %v106
    %134 = vmatpush.msra.mxu0 %v105
    %135 = vmatpush.msra.mxu0 %v104
    %136 = vmatpush.msra.mxu0 %v103
    %137 = vmatpush.msra.mxu0 %v102
    %138 = vmatpush.msra.mxu0 %v101
    %139 = vmatpush.msra.mxu0 %v100
    %140 = vmatmul.f32.gmra.mxu0 %v110
    %v141 = vpop.f32.mrf.mxu0
    %v142 = vadd.f32 0.0, %v141
    %143 = vmatmul.f32.gmra.mxu0 %v113
    %v144 = vpop.f32.mrf.mxu0
    %v145 = vadd.f32 0.0, %v144
    %146 = vmatmul.f32.gmra.mxu0 %v116
    %v147 = vpop.f32.mrf.mxu0
    %v148 = vadd.f32 0.0, %v147
    %149 = vmatmul.f32.gmra.mxu0 %v119
    %v150 = vpop.f32.mrf.mxu0
    %v151 = vadd.f32 0.0, %v150
    %152 = vmatmul.f32.gmra.mxu0 %v122
    %v153 = vpop.f32.mrf.mxu0
    %v154 = vadd.f32 0.0, %v153
    %155 = vdwg.mxu0
    %v157 = vsel %vm108, %v81, 0
    %v160 = vsel %vm108, %v82, 0
    %v163 = vsel %vm108, %v83, 0
    %v166 = vsel %vm108, %v84, 0
    %v169 = vsel %vm108, %v85, 0
    %171 = vmatpush.msra.mxu0 0.0
    %172 = vmatpush.msra.mxu0 0.0
    %173 = vmatpush.msra.mxu0 0.0
    %174 = vmatpush.msra.mxu0 0.0
    %175 = vmatpush.msra.mxu0 0.0
    %176 = vmatpush.msra.mxu0 0.0
    %177 = vmatpush.msra.mxu0 0.0
    %178 = vmatpush.msra.mxu0 0.0
    %179 = vmatpush.msra.mxu0 %v93
    %180 = vmatpush.msra.mxu0 %v92
    %181 = vmatpush.msra.mxu0 %v91
    %182 = vmatpush.msra.mxu0 %v90
    %183 = vmatpush.msra.mxu0 %v89
    %184 = vmatpush.msra.mxu0 %v88
    %185 = vmatpush.msra.mxu0 %v87
    %186 = vmatpush.msra.mxu0 %v86
    %187 = vmatmul.f32.gmra.mxu0 %v157
    %v188 = vpop.f32.mrf.mxu0
    %v189 = vadd.f32 %v142, %v188
    %190 = vmatmul.f32.gmra.mxu0 %v160
    %v191 = vpop.f32.mrf.mxu0
    %v192 = vadd.f32 %v145, %v191
    %193 = vmatmul.f32.gmra.mxu0 %v163
    %v194 = vpop.f32.mrf.mxu0
    %v195 = vadd.f32 %v148, %v194
    %196 = vmatmul.f32.gmra.mxu0 %v166
    %v197 = vpop.f32.mrf.mxu0
    %v198 = vadd.f32 %v151, %v197
    %199 = vmatmul.f32.gmra.mxu0 %v169
    %v200 = vpop.f32.mrf.mxu0
    %v201 = vadd.f32 %v154, %v200
    %202 = vdwg.mxu0
    %v203 = vld [vmem:[#allocation2 + $0x2] sm:$0xff]
    %v204 = vld [vmem:[#allocation2 + $0xa] sm:$0xff]
    %v205 = vld [vmem:[#allocation2 + $0x12] sm:$0xff]
    %v206 = vld [vmem:[#allocation2 + $0x1a] sm:$0xff]
    %v207 = vld [vmem:[#allocation2 + $0x22] sm:$0x3f]
    %s208 = scalar_lea.vmem [#allocation5], 128
    %v209 = vld [vmem:[%s208] sm:$0xff]
    %v210 = vld [vmem:[%s208 + $0x8] sm:$0xff]
    %v211 = vld [vmem:[%s208 + $0x10] sm:$0xff]
    %v212 = vld [vmem:[%s208 + $0x18] sm:$0xff]
    %v213 = vld [vmem:[%s208 + $0x20] sm:$0xff]
    %v214 = vld [vmem:[%s208 + $0x28] sm:$0xff]
    %v215 = vld [vmem:[%s208 + $0x30] sm:$0xff]
    %v216 = vld [vmem:[%s208 + $0x38] sm:$0xff]
    %v218 = vsel %vm108, %v203, 0
    %v221 = vsel %vm108, %v204, 0
    %v224 = vsel %vm108, %v205, 0
    %v227 = vsel %vm108, %v206, 0
    %v230 = vsel %vm108, %v207, 0
    %232 = vmatpush.msra.mxu0 0.0
    %233 = vmatpush.msra.mxu0 0.0
    %234 = vmatpush.msra.mxu0 0.0
    %235 = vmatpush.msra.mxu0 0.0
    %236 = vmatpush.msra.mxu0 0.0
    %237 = vmatpush.msra.mxu0 0.0
    %238 = vmatpush.msra.mxu0 0.0
    %239 = vmatpush.msra.mxu0 0.0
    %240 = vmatpush.msra.mxu0 %v216
    %241 = vmatpush.msra.mxu0 %v215
    %242 = vmatpush.msra.mxu0 %v214
    %243 = vmatpush.msra.mxu0 %v213
    %244 = vmatpush.msra.mxu0 %v212
    %245 = vmatpush.msra.mxu0 %v211
    %246 = vmatpush.msra.mxu0 %v210
    %247 = vmatpush.msra.mxu0 %v209
    %248 = vmatmul.f32.gmra.mxu0 %v218
    %v249 = vpop.f32.mrf.mxu0
    %v250 = vadd.f32 0.0, %v249
    %251 = vmatmul.f32.gmra.mxu0 %v221
    %v252 = vpop.f32.mrf.mxu0
    %v253 = vadd.f32 0.0, %v252
    %254 = vmatmul.f32.gmra.mxu0 %v224
    %v255 = vpop.f32.mrf.mxu0
    %v256 = vadd.f32 0.0, %v255
    %257 = vmatmul.f32.gmra.mxu0 %v227
    %v258 = vpop.f32.mrf.mxu0
    %v259 = vadd.f32 0.0, %v258
    %260 = vmatmul.f32.gmra.mxu0 %v230
    %v261 = vpop.f32.mrf.mxu0
    %v262 = vadd.f32 0.0, %v261
    %263 = vdwg.mxu0
    %v264 = vadd.f32 %v189, %v250
    %v265 = vadd.f32 %v192, %v253
    %v266 = vadd.f32 %v195, %v256
    %v267 = vadd.f32 %v198, %v259
    %v268 = vadd.f32 %v201, %v262
    %v269 = vmax.f32 %v264, 0.0
    %v270 = vmax.f32 %v265, 0.0
    %v271 = vmax.f32 %v266, 0.0
    %v272 = vmax.f32 %v267, 0.0
    %v273 = vmax.f32 %v268, 0.0
    %v274 = vlaneseq
    %v275 = vshrl.u32 %v274, 7
    %v276 = vadd.s32 %v275, 8
    %v277 = vadd.s32 %v275, 16
    %v278 = vadd.s32 %v275, 24
    %v279 = vadd.s32 %v275, 32
    %vm280 = vcmp.lt.s32.totalorder %v275, 0
    %v281 = vsub.s32 0, %v275
    %v282 = vsel %vm280, %v281, %v275
    %v283 = vand.u32 %v282, 65535
    %v284 = vshrl.u32 %v282, 16
    %v286 = vmul.u32 %v283, 52429
    %v287 = vmul.u32 %v283, 52428
    %v288 = vmul.u32 %v284, 52429
    %v289 = vmul.u32 %v284, 52428
    %v290 = vshll.u32 %v287, 16
    %v291 = vshrl.u32 %v287, 16
    %v292 = vshll.u32 %v288, 16
    %v293 = vshrl.u32 %v288, 16
    %vm294 = vc.u32 %v286, %v290
    %v295 = vsel %vm294, 1, 0
    %v296 = vadd.s32 %v286, %v290
    %v297 = vadd.s32 %v289, %v295
    %vm298 = vc.u32 %v296, %v292
    %v299 = vsel %vm298, 1, 0
    %v300 = vadd.s32 %v296, %v292
    %v301 = vadd.s32 %v297, %v299
    %v302 = vadd.s32 %v301, %v291
    %v303 = vadd.s32 %v302, %v293
    %v304 = vshrl.u32 %v303, 4
    %v305 = vmul.u32 %v304, 20
    %v306 = vsub.s32 %v282, %v305
    %v307 = vsub.s32 0, %v306
    %v308 = vsel %vm280, %v307, %v306
    %vm309 = vcmp.lt.s32.totalorder %v276, 0
    %v310 = vsub.s32 0, %v276
    %v311 = vsel %vm309, %v310, %v276
    %v312 = vand.u32 %v311, 65535
    %v313 = vshrl.u32 %v311, 16
    %v315 = vmul.u32 %v312, 52429
    %v316 = vmul.u32 %v312, 52428
    %v317 = vmul.u32 %v313, 52429
    %v318 = vmul.u32 %v313, 52428
    %v319 = vshll.u32 %v316, 16
    %v320 = vshrl.u32 %v316, 16
    %v321 = vshll.u32 %v317, 16
    %v322 = vshrl.u32 %v317, 16
    %vm323 = vc.u32 %v315, %v319
    %v324 = vsel %vm323, 1, 0
    %v325 = vadd.s32 %v315, %v319
    %v326 = vadd.s32 %v318, %v324
    %vm327 = vc.u32 %v325, %v321
    %v328 = vsel %vm327, 1, 0
    %v329 = vadd.s32 %v325, %v321
    %v330 = vadd.s32 %v326, %v328
    %v331 = vadd.s32 %v330, %v320
    %v332 = vadd.s32 %v331, %v322
    %v333 = vshrl.u32 %v332, 4
    %v334 = vmul.u32 %v333, 20
    %v335 = vsub.s32 %v311, %v334
    %v336 = vsub.s32 0, %v335
    %v337 = vsel %vm309, %v336, %v335
    %vm338 = vcmp.lt.s32.totalorder %v277, 0
    %v339 = vsub.s32 0, %v277
    %v340 = vsel %vm338, %v339, %v277
    %v341 = vand.u32 %v340, 65535
    %v342 = vshrl.u32 %v340, 16
    %v344 = vmul.u32 %v341, 52429
    %v345 = vmul.u32 %v341, 52428
    %v346 = vmul.u32 %v342, 52429
    %v347 = vmul.u32 %v342, 52428
    %v348 = vshll.u32 %v345, 16
    %v349 = vshrl.u32 %v345, 16
    %v350 = vshll.u32 %v346, 16
    %v351 = vshrl.u32 %v346, 16
    %vm352 = vc.u32 %v344, %v348
    %v353 = vsel %vm352, 1, 0
    %v354 = vadd.s32 %v344, %v348
    %v355 = vadd.s32 %v347, %v353
    %vm356 = vc.u32 %v354, %v350
    %v357 = vsel %vm356, 1, 0
    %v358 = vadd.s32 %v354, %v350
    %v359 = vadd.s32 %v355, %v357
    %v360 = vadd.s32 %v359, %v349
    %v361 = vadd.s32 %v360, %v351
    %v362 = vshrl.u32 %v361, 4
    %v363 = vmul.u32 %v362, 20
    %v364 = vsub.s32 %v340, %v363
    %v365 = vsub.s32 0, %v364
    %v366 = vsel %vm338, %v365, %v364
    %vm367 = vcmp.lt.s32.totalorder %v278, 0
    %v368 = vsub.s32 0, %v278
    %v369 = vsel %vm367, %v368, %v278
    %v370 = vand.u32 %v369, 65535
    %v371 = vshrl.u32 %v369, 16
    %v373 = vmul.u32 %v370, 52429
    %v374 = vmul.u32 %v370, 52428
    %v375 = vmul.u32 %v371, 52429
    %v376 = vmul.u32 %v371, 52428
    %v377 = vshll.u32 %v374, 16
    %v378 = vshrl.u32 %v374, 16
    %v379 = vshll.u32 %v375, 16
    %v380 = vshrl.u32 %v375, 16
    %vm381 = vc.u32 %v373, %v377
    %v382 = vsel %vm381, 1, 0
    %v383 = vadd.s32 %v373, %v377
    %v384 = vadd.s32 %v376, %v382
    %vm385 = vc.u32 %v383, %v379
    %v386 = vsel %vm385, 1, 0
    %v387 = vadd.s32 %v383, %v379
    %v388 = vadd.s32 %v384, %v386
    %v389 = vadd.s32 %v388, %v378
    %v390 = vadd.s32 %v389, %v380
    %v391 = vshrl.u32 %v390, 4
    %v392 = vmul.u32 %v391, 20
    %v393 = vsub.s32 %v369, %v392
    %v394 = vsub.s32 0, %v393
    %v395 = vsel %vm367, %v394, %v393
    %vm396 = vcmp.lt.s32.totalorder %v279, 0
    %v397 = vsub.s32 0, %v279
    %v398 = vsel %vm396, %v397, %v279
    %v399 = vand.u32 %v398, 65535
    %v400 = vshrl.u32 %v398, 16
    %v402 = vmul.u32 %v399, 52429
    %v403 = vmul.u32 %v399, 52428
    %v404 = vmul.u32 %v400, 52429
    %v405 = vmul.u32 %v400, 52428
    %v406 = vshll.u32 %v403, 16
    %v407 = vshrl.u32 %v403, 16
    %v408 = vshll.u32 %v404, 16
    %v409 = vshrl.u32 %v404, 16
    %vm410 = vc.u32 %v402, %v406
    %v411 = vsel %vm410, 1, 0
    %v412 = vadd.s32 %v402, %v406
    %v413 = vadd.s32 %v405, %v411
    %vm414 = vc.u32 %v412, %v408
    %v415 = vsel %vm414, 1, 0
    %v416 = vadd.s32 %v412, %v408
    %v417 = vadd.s32 %v413, %v415
    %v418 = vadd.s32 %v417, %v407
    %v419 = vadd.s32 %v418, %v409
    %v420 = vshrl.u32 %v419, 4
    %v421 = vmul.u32 %v420, 20
    %v422 = vsub.s32 %v398, %v421
    %v423 = vsub.s32 0, %v422
    %v424 = vsel %vm396, %v423, %v422
    %vm425 = vcmp.ne.s32.totalorder %v308, 0
    %vm426 = vcmp.ne.s32.totalorder %v337, 0
    %vm427 = vcmp.ne.s32.totalorder %v366, 0
    %vm428 = vcmp.ne.s32.totalorder %v395, 0
    %vm429 = vcmp.ne.s32.totalorder %v424, 0
    %vm430 = vcmp.lt.s32.totalorder %v308, 0
    %vm431 = vcmp.lt.s32.totalorder %v337, 0
    %vm432 = vcmp.lt.s32.totalorder %v366, 0
    %vm433 = vcmp.lt.s32.totalorder %v395, 0
    %vm434 = vcmp.lt.s32.totalorder %v424, 0
    %vm435 = vmand %vm430, %vm425
    %vm436 = vmand %vm431, %vm426
    %vm437 = vmand %vm432, %vm427
    %vm438 = vmand %vm433, %vm428
    %vm439 = vmand %vm434, %vm429
    %v440 = vadd.s32 %v308, 20
    %v441 = vadd.s32 %v337, 20
    %v442 = vadd.s32 %v366, 20
    %v443 = vadd.s32 %v395, 20
    %v444 = vadd.s32 %v424, 20
    %v445 = vsel %vm435, %v440, %v308
    %v446 = vsel %vm436, %v441, %v337
    %v447 = vsel %vm437, %v442, %v366
    %v448 = vsel %vm438, %v443, %v395
    %v449 = vsel %vm439, %v444, %v424
    %vm450 = vcmp.ge.s32.totalorder %v445, 1
    %vm451 = vcmp.ge.s32.totalorder %v446, 1
    %vm452 = vcmp.ge.s32.totalorder %v447, 1
    %vm453 = vcmp.ge.s32.totalorder %v448, 1
    %vm454 = vcmp.ge.s32.totalorder %v449, 1
    %vm455 = vcmp.le.s32.totalorder %v445, 16
    %vm456 = vcmp.le.s32.totalorder %v446, 16
    %vm457 = vcmp.le.s32.totalorder %v447, 16
    %vm458 = vcmp.le.s32.totalorder %v448, 16
    %vm459 = vcmp.le.s32.totalorder %v449, 16
    %vm460 = vmand %vm450, %vm455
    %vm461 = vmand %vm451, %vm456
    %vm462 = vmand %vm452, %vm457
    %vm463 = vmand %vm453, %vm458
    %vm464 = vmand %vm454, %vm459
    %v465 = vsel %vm460, 1, 0
    %v466 = vsel %vm461, 1, 0
    %v467 = vsel %vm462, 1, 0
    %v468 = vsel %vm463, 1, 0
    %v469 = vsel %vm464, 1, 0
    %vm470 = vcmp.eq.s32.totalorder %v465, 1
    %vm471 = vcmp.eq.s32.totalorder %v466, 1
    %vm472 = vcmp.eq.s32.totalorder %v467, 1
    %vm473 = vcmp.eq.s32.totalorder %v468, 1
    %vm474 = vcmp.eq.s32.totalorder %v469, 1
    %v475 = vsel %vm470, %v269, 0.0
    %v476 = vsel %vm471, %v270, 0.0
    %v477 = vsel %vm472, %v271, 0.0
    %v478 = vsel %vm473, %v272, 0.0
    %v479 = vsel %vm474, %v273, 0.0
    %v480 = vld [vmem:[#allocation7] sm:$0xff]
    %v481 = vld [vmem:[#allocation7 + $0x8] sm:$0xff]
    %v482 = vld [vmem:[#allocation7 + $0x10] sm:$0xff]
    %v483 = vld [vmem:[#allocation7 + $0x18] sm:$0xff]
    %v484 = vld [vmem:[#allocation7 + $0x20] sm:$0xff]
    %v485 = vld [vmem:[#allocation7 + $0x28] sm:$0xff]
    %v486 = vld [vmem:[#allocation7 + $0x30] sm:$0xff]
    %v487 = vld [vmem:[#allocation7 + $0x38] sm:$0xff]
    %v488 = vld [vmem:[#allocation7 + $0x40] sm:$0xff]
    %v489 = vld [vmem:[#allocation7 + $0x48] sm:$0xff]
    %v490 = vld [vmem:[#allocation7 + $0x50] sm:$0xff]
    %v491 = vld [vmem:[#allocation7 + $0x58] sm:$0xff]
    %v492 = vld [vmem:[#allocation7 + $0x60] sm:$0xff]
    %v493 = vld [vmem:[#allocation7 + $0x68] sm:$0xff]
    %v494 = vld [vmem:[#allocation7 + $0x70] sm:$0xff]
    %v495 = vld [vmem:[#allocation7 + $0x78] sm:$0xff]
    %s496 = scalar_lea.vmem [#allocation7], 128
    %v497 = vld [vmem:[%s496] sm:$0xff]
    %v498 = vld [vmem:[%s496 + $0x8] sm:$0xff]
    %v499 = vld [vmem:[%s496 + $0x10] sm:$0xff]
    %v500 = vld [vmem:[%s496 + $0x18] sm:$0xff]
    %v501 = vld [vmem:[%s496 + $0x20] sm:$0xff]
    %v502 = vld [vmem:[%s496 + $0x28] sm:$0xff]
    %v503 = vld [vmem:[%s496 + $0x30] sm:$0xff]
    %v504 = vld [vmem:[%s496 + $0x38] sm:$0xff]
    %v505 = vld [vmem:[%s496 + $0x40] sm:$0xff]
    %v506 = vld [vmem:[%s496 + $0x48] sm:$0xff]
    %v507 = vld [vmem:[%s496 + $0x50] sm:$0xff]
    %v508 = vld [vmem:[%s496 + $0x58] sm:$0xff]
    %v509 = vld [vmem:[%s496 + $0x60] sm:$0xff]
    %v510 = vld [vmem:[%s496 + $0x68] sm:$0xff]
    %v511 = vld [vmem:[%s496 + $0x70] sm:$0xff]
    %v512 = vld [vmem:[%s496 + $0x78] sm:$0xff]
    %vm518 = vcmask 1046528
    %v519 = vrot.slane %v475, 1
    %v520 = vrot.slane %v476, 1
    %v521 = vsel %vm518, %v519, %v520
    %v522 = vrot.slane %v477, 1
    %v523 = vsel %vm518, %v520, %v522
    %v524 = vrot.slane %v478, 1
    %v525 = vsel %vm518, %v522, %v524
    %v526 = vrot.slane %v479, 1
    %v527 = vsel %vm518, %v524, %v526
    %533 = vmatpush.msra.mxu0 %v512
    %534 = vmatpush.msra.mxu0 %v511
    %535 = vmatpush.msra.mxu0 %v510
    %536 = vmatpush.msra.mxu0 %v509
    %537 = vmatpush.msra.mxu0 %v508
    %538 = vmatpush.msra.mxu0 %v507
    %539 = vmatpush.msra.mxu0 %v506
    %540 = vmatpush.msra.mxu0 %v505
    %541 = vmatpush.msra.mxu0 %v504
    %542 = vmatpush.msra.mxu0 %v503
    %543 = vmatpush.msra.mxu0 %v502
    %544 = vmatpush.msra.mxu0 %v501
    %545 = vmatpush.msra.mxu0 %v500
    %546 = vmatpush.msra.mxu0 %v499
    %547 = vmatpush.msra.mxu0 %v498
    %548 = vmatpush.msra.mxu0 %v497
    %549 = vmatmul.f32.gmra.mxu0 %v521
    %v550 = vpop.f32.mrf.mxu0
    %v551 = vadd.f32 0.0, %v550
    %552 = vmatmul.f32.gmra.mxu0 %v523
    %v553 = vpop.f32.mrf.mxu0
    %v554 = vadd.f32 0.0, %v553
    %555 = vmatmul.f32.gmra.mxu0 %v525
    %v556 = vpop.f32.mrf.mxu0
    %v557 = vadd.f32 0.0, %v556
    %558 = vmatmul.f32.gmra.mxu0 %v527
    %v559 = vpop.f32.mrf.mxu0
    %v560 = vadd.f32 0.0, %v559
    %561 = vmatmul.f32.gmra.mxu0 %v526
    %v562 = vpop.f32.mrf.mxu0
    %v563 = vadd.f32 0.0, %v562
    %564 = vdwg.mxu0
    %565 = vmatpush.msra.mxu0 %v495
    %566 = vmatpush.msra.mxu0 %v494
    %567 = vmatpush.msra.mxu0 %v493
    %568 = vmatpush.msra.mxu0 %v492
    %569 = vmatpush.msra.mxu0 %v491
    %570 = vmatpush.msra.mxu0 %v490
    %571 = vmatpush.msra.mxu0 %v489
    %572 = vmatpush.msra.mxu0 %v488
    %573 = vmatpush.msra.mxu0 %v487
    %574 = vmatpush.msra.mxu0 %v486
    %575 = vmatpush.msra.mxu0 %v485
    %576 = vmatpush.msra.mxu0 %v484
    %577 = vmatpush.msra.mxu0 %v483
    %578 = vmatpush.msra.mxu0 %v482
    %579 = vmatpush.msra.mxu0 %v481
    %580 = vmatpush.msra.mxu0 %v480
    %581 = vmatmul.f32.gmra.mxu0 %v475
    %v582 = vpop.f32.mrf.mxu0
    %v583 = vadd.f32 %v551, %v582
    %584 = vmatmul.f32.gmra.mxu0 %v476
    %v585 = vpop.f32.mrf.mxu0
    %v586 = vadd.f32 %v554, %v585
    %587 = vmatmul.f32.gmra.mxu0 %v477
    %v588 = vpop.f32.mrf.mxu0
    %v589 = vadd.f32 %v557, %v588
    %590 = vmatmul.f32.gmra.mxu0 %v478
    %v591 = vpop.f32.mrf.mxu0
    %v592 = vadd.f32 %v560, %v591
    %593 = vmatmul.f32.gmra.mxu0 %v479
    %v594 = vpop.f32.mrf.mxu0
    %v595 = vadd.f32 %v563, %v594
    %596 = vdwg.mxu0
    %s597 = scalar_lea.vmem [#allocation7], 256
    %v598 = vld [vmem:[%s597] sm:$0xff]
    %v599 = vld [vmem:[%s597 + $0x8] sm:$0xff]
    %v600 = vld [vmem:[%s597 + $0x10] sm:$0xff]
    %v601 = vld [vmem:[%s597 + $0x18] sm:$0xff]
    %v602 = vld [vmem:[%s597 + $0x20] sm:$0xff]
    %v603 = vld [vmem:[%s597 + $0x28] sm:$0xff]
    %v604 = vld [vmem:[%s597 + $0x30] sm:$0xff]
    %v605 = vld [vmem:[%s597 + $0x38] sm:$0xff]
    %v606 = vld [vmem:[%s597 + $0x40] sm:$0xff]
    %v607 = vld [vmem:[%s597 + $0x48] sm:$0xff]
    %v608 = vld [vmem:[%s597 + $0x50] sm:$0xff]
    %v609 = vld [vmem:[%s597 + $0x58] sm:$0xff]
    %v610 = vld [vmem:[%s597 + $0x60] sm:$0xff]
    %v611 = vld [vmem:[%s597 + $0x68] sm:$0xff]
    %v612 = vld [vmem:[%s597 + $0x70] sm:$0xff]
    %v613 = vld [vmem:[%s597 + $0x78] sm:$0xff]
    %vm614 = vcmask 1045504
    %v615 = vrot.slane %v475, 2
    %v616 = vrot.slane %v476, 2
    %v617 = vsel %vm614, %v615, %v616
    %v618 = vrot.slane %v477, 2
    %v619 = vsel %vm614, %v616, %v618
    %v620 = vrot.slane %v478, 2
    %v621 = vsel %vm614, %v618, %v620
    %v622 = vrot.slane %v479, 2
    %v623 = vsel %vm614, %v620, %v622
    %629 = vmatpush.msra.mxu0 %v613
    %630 = vmatpush.msra.mxu0 %v612
    %631 = vmatpush.msra.mxu0 %v611
    %632 = vmatpush.msra.mxu0 %v610
    %633 = vmatpush.msra.mxu0 %v609
    %634 = vmatpush.msra.mxu0 %v608
    %635 = vmatpush.msra.mxu0 %v607
    %636 = vmatpush.msra.mxu0 %v606
    %637 = vmatpush.msra.mxu0 %v605
    %638 = vmatpush.msra.mxu0 %v604
    %639 = vmatpush.msra.mxu0 %v603
    %640 = vmatpush.msra.mxu0 %v602
    %641 = vmatpush.msra.mxu0 %v601
    %642 = vmatpush.msra.mxu0 %v600
    %643 = vmatpush.msra.mxu0 %v599
    %644 = vmatpush.msra.mxu0 %v598
    %645 = vmatmul.f32.gmra.mxu0 %v617
    %v646 = vpop.f32.mrf.mxu0
    %v647 = vadd.f32 0.0, %v646
    %648 = vmatmul.f32.gmra.mxu0 %v619
    %v649 = vpop.f32.mrf.mxu0
    %v650 = vadd.f32 0.0, %v649
    %651 = vmatmul.f32.gmra.mxu0 %v621
    %v652 = vpop.f32.mrf.mxu0
    %v653 = vadd.f32 0.0, %v652
    %654 = vmatmul.f32.gmra.mxu0 %v623
    %v655 = vpop.f32.mrf.mxu0
    %v656 = vadd.f32 0.0, %v655
    %657 = vmatmul.f32.gmra.mxu0 %v622
    %v658 = vpop.f32.mrf.mxu0
    %v659 = vadd.f32 0.0, %v658
    %660 = vdwg.mxu0
    %v661 = vadd.f32 %v583, %v647
    %v662 = vadd.f32 %v586, %v650
    %v663 = vadd.f32 %v589, %v653
    %v664 = vadd.f32 %v592, %v656
    %v665 = vadd.f32 %v595, %v659
    %v666 = vld [vmem:[#allocation2 + $0x2] sm:$0xff]
    %v667 = vld [vmem:[#allocation2 + $0xa] sm:$0xff]
    %v668 = vld [vmem:[#allocation2 + $0x12] sm:$0xff]
    %v669 = vld [vmem:[#allocation2 + $0x1a] sm:$0xff]
    %v670 = vld [vmem:[#allocation2 + $0x22] sm:$0xf]
    %v671 = vld [vmem:[#allocation8] sm:$0xff]
    %v672 = vld [vmem:[#allocation8 + $0x8] sm:$0xff]
    %v673 = vld [vmem:[#allocation8 + $0x10] sm:$0xff]
    %v674 = vld [vmem:[#allocation8 + $0x18] sm:$0xff]
    %v675 = vld [vmem:[#allocation8 + $0x20] sm:$0xff]
    %v676 = vld [vmem:[#allocation8 + $0x28] sm:$0xff]
    %v677 = vld [vmem:[#allocation8 + $0x30] sm:$0xff]
    %v678 = vld [vmem:[#allocation8 + $0x38] sm:$0xff]
    %v680 = vsel %vm108, %v666, 0
    %v683 = vsel %vm108, %v667, 0
    %v686 = vsel %vm108, %v668, 0
    %v689 = vsel %vm108, %v669, 0
    %v692 = vsel %vm108, %v670, 0
    %694 = vmatpush.msra.mxu0 0.0
    %695 = vmatpush.msra.mxu0 0.0
    %696 = vmatpush.msra.mxu0 0.0
    %697 = vmatpush.msra.mxu0 0.0
    %698 = vmatpush.msra.mxu0 0.0
    %699 = vmatpush.msra.mxu0 0.0
    %700 = vmatpush.msra.mxu0 0.0
    %701 = vmatpush.msra.mxu0 0.0
    %702 = vmatpush.msra.mxu0 %v678
    %703 = vmatpush.msra.mxu0 %v677
    %704 = vmatpush.msra.mxu0 %v676
    %705 = vmatpush.msra.mxu0 %v675
    %706 = vmatpush.msra.mxu0 %v674
    %707 = vmatpush.msra.mxu0 %v673
    %708 = vmatpush.msra.mxu0 %v672
    %709 = vmatpush.msra.mxu0 %v671
    %710 = vmatmul.f32.gmra.mxu0 %v680
    %v711 = vpop.f32.mrf.mxu0
    %v712 = vadd.f32 0.0, %v711
    %713 = vmatmul.f32.gmra.mxu0 %v683
    %v714 = vpop.f32.mrf.mxu0
    %v715 = vadd.f32 0.0, %v714
    %716 = vmatmul.f32.gmra.mxu0 %v686
    %v717 = vpop.f32.mrf.mxu0
    %v718 = vadd.f32 0.0, %v717
    %719 = vmatmul.f32.gmra.mxu0 %v689
    %v720 = vpop.f32.mrf.mxu0
    %v721 = vadd.f32 0.0, %v720
    %722 = vmatmul.f32.gmra.mxu0 %v692
    %v723 = vpop.f32.mrf.mxu0
    %v724 = vadd.f32 0.0, %v723
    %725 = vdwg.mxu0
    %v726 = vadd.f32 %v661, %v712
    %v727 = vadd.f32 %v662, %v715
    %v728 = vadd.f32 %v663, %v718
    %v729 = vadd.f32 %v664, %v721
    %v730 = vadd.f32 %v665, %v724
    %v731 = vmax.f32 %v726, 0.0
    %v732 = vmax.f32 %v727, 0.0
    %v733 = vmax.f32 %v728, 0.0
    %v734 = vmax.f32 %v729, 0.0
    %v735 = vmax.f32 %v730, 0.0
    %736 = vst [vmem:[#allocation10] sm:$0xff] %v731
    %737 = vst [vmem:[#allocation10 + $0x8] sm:$0xff] %v732
    %738 = vst [vmem:[#allocation10 + $0xc] sm:$0xf0] %v733
    %739 = vst [vmem:[#allocation10 + $0x14] sm:$0xff] %v734
    %740 = vst [vmem:[#allocation10 + $0x1c] sm:$0xf] %v735
    // Predicated region
    $region34: #{tpu_custom_call.1} parent=1 // pred_check
      _
    $region35: #{tpu_custom_call.1} parent=1 // pred_check_branch
      %742 = sbr.rel (0) target = $region37
    $region36: #{tpu_custom_call.1} parent=1 // pred_region
      %744 = vsyncadd [#allocation4], 0
      %s745 = sshll.u32 [#allocation10], 4
      %s746 = int_to_ptr.vmem [resolvable:$true] %s745
      %s747 = sshll.u32 %s4, 4
      %s748 = int_to_ptr.hbm [resolvable:$true] %s747
      %753 = dma.vmem_to_hbm [thread:$0]  %s746, 512, %s748, [#allocation4], 128, 128, 8
    $region37: #{tpu_custom_call.1} parent=1 // pred_fallthru
      _
    // Predicated region
    $region38: #{tpu_custom_call.1} parent=1 // pred_check
      _
    $region39: #{tpu_custom_call.1} parent=1 // pred_check_branch
      %755 = sbr.rel (0) target = $region41
    $region40: #{tpu_custom_call.1} parent=1 // pred_region
      %757 = dma.done [#allocation4], 512
    $region41: #{tpu_custom_call.1} parent=1 // pred_fallthru
      _
    %758 = vsyncpa [#allocation3], 1
    %759 = vsyncpa [#allocation6], 1
    %760 = vsyncpa [#allocation9], 1
    %761 = vsyncpa [#allocation4], 1

</llo_original>
